<compile_context>
chip_gen: v5e
topology: v5e:2x2
jax: 0.10.0
libtpu: 0.0.40
codegen_flags: <defaults>
</compile_context>

<pallas_src>
import functools

import jax
import jax.numpy as jnp
from jax import lax
from jax.experimental import pallas as pl
from jax.experimental.pallas import tpu as pltpu


# ----------------------------------------------------------------------------
# Fused Pallas kernel
#   a_ref  : (M, 9*Ct + 1)       im2col patches of the 4 inputs (concat on K)
#                                plus a trailing ones column (bias fold)
#   wd_ref : (9*Ct + 1, 4*inner) block-diag [w1|w2|w3|w3] + bias row
#   wu_ref : (9*midc, 4*outer)   fused 9-window / 4-phase up weight
#   bu_ref : (1, 4*outer)        up bias tiled over the 4 phases
#   out_ref: (M, out_w)          lanes [0, 4*outer)          = fake phases
#                                lanes [4*outer, 4*outer+4*inner) = [x1..x4]
#                                remaining lanes              = zero fill
# ----------------------------------------------------------------------------
def _agis_fused_kernel(a_ref, wd_ref, wu_ref, bu_ref, out_ref, *,
                       B, Ho, Wo, inner_nc, outer_nc, out_w):
    M = B * Ho * Wo
    midc = 3 * inner_nc

    # ---- down path: LeakyReLU(0.2) fused with one block-diagonal matmul.
    # leaky(0)=0 keeps the im2col zero padding correct; leaky(1)=1 keeps the
    # ones column intact so the bias row of wd rides the MXU for free.
    a = a_ref[...]
    a = jnp.where(a >= 0.0, a, 0.2 * a)
    od = jnp.dot(a, wd_ref[...], preferred_element_type=jnp.float32)
    # od lanes: [0:i)=x1  [i:2i)=x2  [2i:3i)=x3  [3i:4i)=x4   (i = inner_nc)

    # ---- up-path input: ReLU(mid), zero-padded by 1 pixel, kept entirely in
    # registers (no VMEM scratch round-trip).  relu(0)=0 -> zero pad safe.
    mid = jnp.maximum(od[:, :midc], 0.0).reshape(B, Ho, Wo, midc)
    zr = jnp.zeros((B, 1, Wo, midc), jnp.float32)
    t = jnp.concatenate([zr, mid, zr], axis=1)            # (B, Ho+2, Wo,   midc)
    zc = jnp.zeros((B, Ho + 2, 1, midc), jnp.float32)
    midp = jnp.concatenate([zc, t, zc], axis=2)           # (B, Ho+2, Wo+2, midc)

    # ---- ConvTranspose2d(k=4, s=2, p=1) as a single fused 4-phase matmul:
    # one 9-window tensor (M, 9*midc) against a (9*midc, 4*outer) weight whose
    # unused (window, phase) blocks are structural zeros.
    wins = jnp.concatenate(
        [midp[:, r:r + Ho, c:c + Wo, :] for r in range(3) for c in range(3)],
        axis=-1).reshape(M, 9 * midc)
    up = jnp.dot(wins, wu_ref[...],
                 preferred_element_type=jnp.float32) + bu_ref[...]

    # ---- single lane-dense (multiple-of-128) store
    payload = 4 * outer_nc + 4 * inner_nc
    pieces = [up, od]
    if out_w > payload:
        pieces.append(jnp.zeros((M, out_w - payload), jnp.float32))
    out_ref[...] = jnp.concatenate(pieces, axis=-1)


# ----------------------------------------------------------------------------
# Glue (plain JAX, layout plumbing only): im2col + weight re-layout
# ----------------------------------------------------------------------------
def _im2col_s2_3x3(x_nhwc):
    """(N,H,W,C) -> (N*H/2*W/2, 9*C); zero pad 1, stride 2, patch order (kh,kw,c)."""
    N, H, W, C = x_nhwc.shape
    Ho, Wo = H // 2, W // 2
    xp = jnp.pad(x_nhwc, ((0, 0), (1, 1), (1, 1), (0, 0)))
    cols = [xp[:, kh:kh + 2 * Ho:2, kw:kw + 2 * Wo:2, :]
            for kh in range(3) for kw in range(3)]
    return jnp.concatenate(cols, axis=-1).reshape(N * Ho * Wo, 9 * C)


def _down_weight_mat(w):
    """(Cout, Cin, 3, 3) -> (9*Cin, Cout), row order (kh, kw, ci)."""
    return jnp.transpose(w, (2, 3, 1, 0)).reshape(-1, w.shape[0])


def _up_weight_mat_fused(wt):
    """ConvTranspose weight (Cin, Cout, 4, 4) -> (9*Cin, 4*Cout) fused
    9-window / 4-phase matrix.  Rows ordered (window r, window c, ci) with
    r, c in 0..2; columns grouped by phase p = 2a+b.  Window (r, c) feeds
    phase (a, b) iff (r-a, c-b) in {0,1}^2 via kernel element
    (3-a-2(r-a), 3-b-2(c-b)); all other blocks are structural zeros."""
    Cin, Cout = wt.shape[0], wt.shape[1]
    zeros = jnp.zeros((Cin, Cout), wt.dtype)
    rows = []
    for r in range(3):
        for c in range(3):
            cols = []
            for a in (0, 1):
                for b in (0, 1):
                    dy, dx = r - a, c - b
                    if dy in (0, 1) and dx in (0, 1):
                        cols.append(wt[:, :, 3 - a - 2 * dy, 3 - b - 2 * dx])
                    else:
                        cols.append(zeros)
            rows.append(jnp.concatenate(cols, axis=1))      # (Cin, 4*Cout)
    return jnp.concatenate(rows, axis=0)                    # (9*Cin, 4*Cout)


def _block_diag(mats):
    K = sum(m.shape[0] for m in mats)
    N = sum(m.shape[1] for m in mats)
    out = jnp.zeros((K, N), mats[0].dtype)
    r = c = 0
    for m in mats:
        out = out.at[r:r + m.shape[0], c:c + m.shape[1]].set(m)
        r += m.shape[0]
        c += m.shape[1]
    return out


# ----------------------------------------------------------------------------
# AGISNetBlock (innermost) forward
# ----------------------------------------------------------------------------
def init_params(key, input_cont=4, input_style=4, inner_nc=8, outer_nc=8):
    ks = jax.random.split(key, 8)
    scale = 0.1
    return {
        "w1": scale * jax.random.normal(ks[0], (inner_nc, input_cont, 3, 3), jnp.float32),
        "b1": scale * jax.random.normal(ks[1], (inner_nc,), jnp.float32),
        "w2": scale * jax.random.normal(ks[2], (inner_nc, input_style, 3, 3), jnp.float32),
        "b2": scale * jax.random.normal(ks[3], (inner_nc,), jnp.float32),
        "w3": scale * jax.random.normal(ks[4], (inner_nc, input_style, 3, 3), jnp.float32),
        "b3": scale * jax.random.normal(ks[5], (inner_nc,), jnp.float32),
        # ConvTranspose2d(inner_nc*3, outer_nc, 4, 2, 1): weight (Cin, Cout, 4, 4)
        "wt": scale * jax.random.normal(ks[6], (inner_nc * 3, outer_nc, 4, 4), jnp.float32),
        "bt": scale * jax.random.normal(ks[7], (outer_nc,), jnp.float32),
    }


def agisnet_block_forward(params, content, shape, style, style_ca):
    B, Cc, H, W = content.shape
    inner_nc = params["w1"].shape[0]
    outer_nc = params["wt"].shape[1]
    Ho, Wo = H // 2, W // 2
    M = B * Ho * Wo
    payload = 4 * outer_nc + 4 * inner_nc
    out_w = max(128, -(-payload // 128) * 128)     # lane-dense output width

    to_nhwc = lambda x: jnp.transpose(x, (0, 2, 3, 1))

    # ---- input-side glue: layout + im2col + ones column (bias fold).
    # All activations / matmuls / the transposed conv live in the kernel.
    a_down = jnp.concatenate(
        [_im2col_s2_3x3(to_nhwc(t)) for t in (content, shape, style, style_ca)]
        + [jnp.ones((M, 1), jnp.float32)], axis=-1)              # (M, 9*Ct+1)

    w1m, w2m, w3m = (_down_weight_mat(params[k]) for k in ("w1", "w2", "w3"))
    bias_row = jnp.concatenate([params["b1"], params["b2"],
                                params["b3"], params["b3"]]).reshape(1, -1)
    wd = jnp.concatenate([_block_diag([w1m, w2m, w3m, w3m]), bias_row],
                         axis=0)                                 # (9*Ct+1, 4*inner)
    wu = _up_weight_mat_fused(params["wt"])                      # (9*midc, 4*outer)
    bias_u4 = jnp.tile(params["bt"], 4).reshape(1, -1)           # (1, 4*outer)

    # Single-block gridless kernel: everything << scoped VMEM on all gens.
    # TODO(synk): for large B/H/W, add an M ("parallel") grid axis with whole
    # spatial tiles (halo handled per tile) and re-derive the budget for v7x
    # (64 MiB physical / 32 MiB scoped VMEM) + set vmem_limit_bytes.
    vmem_bytes = 4 * (a_down.size + wd.size + wu.size + bias_u4.size
                      + M * out_w) * 2             # x2: conservative dbl-buffer
    assert vmem_bytes < 16 * 1024 * 1024, vmem_bytes

    kernel = functools.partial(_agis_fused_kernel, B=B, Ho=Ho, Wo=Wo,
                               inner_nc=inner_nc, outer_nc=outer_nc,
                               out_w=out_w)
    res = pl.pallas_call(
        kernel,
        out_shape=jax.ShapeDtypeStruct((M, out_w), jnp.float32),
        compiler_params=pltpu.CompilerParams(
            # allow XLA to fuse the im2col producer into the A operand
            allow_input_fusion=[True, False, False, False]),
    )(a_down, wd, wu, bias_u4)

    # ---- output-side glue (layout plumbing only)
    up = res[:, :4 * outer_nc]
    od = res[:, 4 * outer_nc:payload]

    fake = up.reshape(B, Ho, Wo, 2, 2, outer_nc)                 # (b,i,j,a,b2,co)
    fake = jnp.transpose(fake, (0, 1, 3, 2, 4, 5)).reshape(B, H, W, outer_nc)
    fake = jnp.transpose(fake, (0, 3, 1, 2))                     # NCHW (B,8,H,W)

    x3 = jnp.transpose(od[:, 2 * inner_nc:3 * inner_nc]
                       .reshape(B, Ho, Wo, inner_nc), (0, 3, 1, 2))
    x4 = jnp.transpose(od[:, 3 * inner_nc:4 * inner_nc]
                       .reshape(B, Ho, Wo, inner_nc), (0, 3, 1, 2))

    out = jnp.concatenate([fake, content, shape], axis=1)        # cross=1, skip
    return out, x3, x4


# ----------------------------------------------------------------------------
# Pure-JAX reference (lax convs) of the PyTorch module, for validation
# ----------------------------------------------------------------------------
def _ref_forward(params, content, shape, style, style_ca):
    leaky = lambda x: jnp.where(x >= 0, x, 0.2 * x)
    dn = lax.conv_dimension_numbers(content.shape, params["w1"].shape,
                                    ("NCHW", "OIHW", "NCHW"))

    def conv_s2(x, w, b):
        y = lax.conv_general_dilated(
            leaky(x), w, window_strides=(2, 2), padding=((1, 1), (1, 1)),
            dimension_numbers=dn, precision=lax.Precision.HIGHEST)
        return y + b[None, :, None, None]

    x1 = conv_s2(content, params["w1"], params["b1"])
    x2 = conv_s2(shape, params["w2"], params["b2"])
    x3 = conv_s2(style, params["w3"], params["b3"])
    x4 = conv_s2(style_ca, params["w3"], params["b3"])
    mid = jax.nn.relu(jnp.concatenate([x1, x2, x3], axis=1))

    # ConvTranspose2d(k=4,s=2,p=1) == lhs-dilated conv, flipped + swapped kernel
    w_eq = jnp.transpose(params["wt"][:, :, ::-1, ::-1], (1, 0, 2, 3))
    dn2 = lax.conv_dimension_numbers(mid.shape, w_eq.shape,
                                     ("NCHW", "OIHW", "NCHW"))
    fake = lax.conv_general_dilated(
        mid, w_eq, window_strides=(1, 1), padding=((2, 2), (2, 2)),
        lhs_dilation=(2, 2), dimension_numbers=dn2,
        precision=lax.Precision.HIGHEST) + params["bt"][None, :, None, None]

    out = jnp.concatenate([fake, content, shape], axis=1)
    return out, x3, x4


if __name__ == "__main__":
    key = jax.random.PRNGKey(0)
    kp, k1, k2, k3, k4 = jax.random.split(key, 5)

    params = init_params(kp)

    B, C, H, W = 2, 4, 16, 16
    content = jax.random.normal(k1, (B, C, H, W), jnp.float32)
    shape = jax.random.normal(k2, (B, C, H, W), jnp.float32)
    style = jax.random.normal(k3, (B, C, H, W), jnp.float32)
    style_ca = jax.random.normal(k4, (B, C, H, W), jnp.float32)

    fwd = jax.jit(agisnet_block_forward)
    out, x3, x4 = fwd(params, content, shape, style, style_ca)
    jax.block_until_ready((out, x3, x4))

    assert out.shape == (B, 8 + 2 * C, H, W), out.shape          # (2, 16, 16, 16)
    assert x3.shape == (B, 8, H // 2, W // 2), x3.shape          # (2, 8, 8, 8)
    assert x4.shape == (B, 8, H // 2, W // 2), x4.shape

    ref_out, ref_x3, ref_x4 = _ref_forward(params, content, shape, style, style_ca)
    for got, ref in ((out, ref_out), (x3, ref_x3), (x4, ref_x4)):
        err = float(jnp.max(jnp.abs(got - ref)))
        assert jnp.allclose(got, ref, atol=1e-2, rtol=1e-2), err

    print("KERNEL_OK")
</pallas_src>

<mosaic_0001>
module attributes {stable_mosaic.version = 11 : i64} {
  func.func @_agis_fused_kernel(%arg0: memref<128x145xf32, #tpu.memory_space<vmem>>, %arg1: memref<145x32xf32, #tpu.memory_space<vmem>>, %arg2: memref<216x32xf32, #tpu.memory_space<vmem>>, %arg3: memref<1x32xf32, #tpu.memory_space<vmem>>, %arg4: memref<128x128xf32, #tpu.memory_space<vmem>>) attributes {dimension_semantics = [], scalar_prefetch = 0 : i64, scratch_operands = 0 : i64, tpu.core_type = #tpu.core_type<tc>} {
    %c0 = arith.constant 0 : index
    %c0_0 = arith.constant 0 : index
    %0 = vector.load %arg0[%c0, %c0_0] : memref<128x145xf32, #tpu.memory_space<vmem>>, vector<128x145xf32>
    %cst = arith.constant 0.000000e+00 : f32
    %1 = vector.broadcast %cst : f32 to vector<128x145xf32>
    %2 = arith.cmpf oge, %0, %1 : vector<128x145xf32>
    %cst_1 = arith.constant 2.000000e-01 : f32
    %3 = vector.broadcast %cst_1 : f32 to vector<128x145xf32>
    %4 = arith.mulf %3, %0 : vector<128x145xf32>
    %5 = arith.select %2, %0, %4 : vector<128x145xi1>, vector<128x145xf32>
    %c0_2 = arith.constant 0 : index
    %c0_3 = arith.constant 0 : index
    %6 = vector.load %arg1[%c0_2, %c0_3] : memref<145x32xf32, #tpu.memory_space<vmem>>, vector<145x32xf32>
    %cst_4 = arith.constant dense<0.000000e+00> : vector<128x32xf32>
    %7 = tpu.matmul %5, %6, %cst_4 {dimension_numbers = #tpu.dot_dimension_numbers<[1], [0], [0], [1], [0, 0, 1, 1], [], []>} : vector<128x145xf32>, vector<145x32xf32>, vector<128x32xf32> -> vector<128x32xf32>
    %8 = vector.extract_strided_slice %7 {offsets = [0, 0], sizes = [128, 24], strides = [1, 1]} : vector<128x32xf32> to vector<128x24xf32>
    %cst_5 = arith.constant 0.000000e+00 : f32
    %9 = vector.broadcast %cst_5 : f32 to vector<128x24xf32>
    %10 = arith.maximumf %8, %9 : vector<128x24xf32>
    %11 = vector.shape_cast %10 : vector<128x24xf32> to vector<2x8x8x24xf32>
    %cst_6 = arith.constant 0.000000e+00 : f32
    %12 = vector.broadcast %cst_6 : f32 to vector<2x1x8x24xf32>
    %13 = tpu.concatenate %12, %11, %12 in 1 : vector<2x1x8x24xf32>, vector<2x8x8x24xf32>, vector<2x1x8x24xf32> -> vector<2x10x8x24xf32>
    %cst_7 = arith.constant 0.000000e+00 : f32
    %14 = vector.broadcast %cst_7 : f32 to vector<2x10x1x24xf32>
    %15 = tpu.concatenate %14, %13, %14 in 2 : vector<2x10x1x24xf32>, vector<2x10x8x24xf32>, vector<2x10x1x24xf32> -> vector<2x10x10x24xf32>
    %16 = vector.extract_strided_slice %15 {offsets = [0, 0, 0, 0], sizes = [2, 8, 8, 24], strides = [1, 1, 1, 1]} : vector<2x10x10x24xf32> to vector<2x8x8x24xf32>
    %17 = vector.extract_strided_slice %15 {offsets = [0, 0, 1, 0], sizes = [2, 8, 8, 24], strides = [1, 1, 1, 1]} : vector<2x10x10x24xf32> to vector<2x8x8x24xf32>
    %18 = vector.extract_strided_slice %15 {offsets = [0, 0, 2, 0], sizes = [2, 8, 8, 24], strides = [1, 1, 1, 1]} : vector<2x10x10x24xf32> to vector<2x8x8x24xf32>
    %19 = vector.extract_strided_slice %15 {offsets = [0, 1, 0, 0], sizes = [2, 8, 8, 24], strides = [1, 1, 1, 1]} : vector<2x10x10x24xf32> to vector<2x8x8x24xf32>
    %20 = vector.extract_strided_slice %15 {offsets = [0, 1, 1, 0], sizes = [2, 8, 8, 24], strides = [1, 1, 1, 1]} : vector<2x10x10x24xf32> to vector<2x8x8x24xf32>
    %21 = vector.extract_strided_slice %15 {offsets = [0, 1, 2, 0], sizes = [2, 8, 8, 24], strides = [1, 1, 1, 1]} : vector<2x10x10x24xf32> to vector<2x8x8x24xf32>
    %22 = vector.extract_strided_slice %15 {offsets = [0, 2, 0, 0], sizes = [2, 8, 8, 24], strides = [1, 1, 1, 1]} : vector<2x10x10x24xf32> to vector<2x8x8x24xf32>
    %23 = vector.extract_strided_slice %15 {offsets = [0, 2, 1, 0], sizes = [2, 8, 8, 24], strides = [1, 1, 1, 1]} : vector<2x10x10x24xf32> to vector<2x8x8x24xf32>
    %24 = vector.extract_strided_slice %15 {offsets = [0, 2, 2, 0], sizes = [2, 8, 8, 24], strides = [1, 1, 1, 1]} : vector<2x10x10x24xf32> to vector<2x8x8x24xf32>
    %25 = tpu.concatenate %16, %17, %18, %19, %20, %21, %22, %23, %24 in 3 : vector<2x8x8x24xf32>, vector<2x8x8x24xf32>, vector<2x8x8x24xf32>, vector<2x8x8x24xf32>, vector<2x8x8x24xf32>, vector<2x8x8x24xf32>, vector<2x8x8x24xf32>, vector<2x8x8x24xf32>, vector<2x8x8x24xf32> -> vector<2x8x8x216xf32>
    %26 = vector.shape_cast %25 : vector<2x8x8x216xf32> to vector<128x216xf32>
    %c0_8 = arith.constant 0 : index
    %c0_9 = arith.constant 0 : index
    %27 = vector.load %arg2[%c0_8, %c0_9] : memref<216x32xf32, #tpu.memory_space<vmem>>, vector<216x32xf32>
    %cst_10 = arith.constant dense<0.000000e+00> : vector<128x32xf32>
    %28 = tpu.matmul %26, %27, %cst_10 {dimension_numbers = #tpu.dot_dimension_numbers<[1], [0], [0], [1], [0, 0, 1, 1], [], []>} : vector<128x216xf32>, vector<216x32xf32>, vector<128x32xf32> -> vector<128x32xf32>
    %c0_11 = arith.constant 0 : index
    %c0_12 = arith.constant 0 : index
    %29 = vector.load %arg3[%c0_11, %c0_12] : memref<1x32xf32, #tpu.memory_space<vmem>>, vector<1x32xf32>
    %30 = vector.broadcast %29 : vector<1x32xf32> to vector<128x32xf32>
    %31 = arith.addf %28, %30 : vector<128x32xf32>
    %cst_13 = arith.constant 0.000000e+00 : f32
    %32 = vector.broadcast %cst_13 : f32 to vector<128x64xf32>
    %33 = tpu.concatenate %31, %7, %32 in 1 : vector<128x32xf32>, vector<128x32xf32>, vector<128x64xf32> -> vector<128x128xf32>
    %c0_14 = arith.constant 0 : index
    %c0_15 = arith.constant 0 : index
    %34 = vector.load %arg4[%c0_14, %c0_15] : memref<128x128xf32, #tpu.memory_space<vmem>>, vector<128x128xf32>
    tpu.vector_store %arg4[%c0_14, %c0_15], %33 {strides = array<i32>} : memref<128x128xf32, #tpu.memory_space<vmem>>, vector<128x128xf32>,
    return
  }
}

</mosaic_0001>

<llo_original>
// kernel: tile.8
$region0: #{tile.8}
  #allocation0 [shape = 's32[1]{0}', space=sflag, size = 0x4, scoped, tag = 'scoped memory for tile.8']
  %s0 = inlined_call_operand.vmem [shape: f32[8], index: 0, kind: input, shape index: {}]
  %s1 = inlined_call_operand.vmem [shape: f32[4,8], index: 1, kind: output, shape index: {}]
  // Predicated region
  $region2: #{tile.8} parent=0 // pred_check
    _
  $region3: #{tile.8} parent=0 // pred_check_branch
    %3 = sbr.rel (0) target = $region5
  $region4: #{tile.8} parent=0 // pred_region
    _
  $region5: #{tile.8} parent=0 // pred_fallthru
    _
  %v4 = vld [vmem:[%s0] ss:$0 sm:$0xff]
  %5 = vst [vmem:[%s1] sm:$0xf] %v4

// kernel: tile.9
$region0: #{tile.9}
  %s0 = inlined_call_operand.vmem [shape: f32[4,8], index: 0, kind: input, shape index: {}]
  %s1 = inlined_call_operand.vmem [shape: f32[1,32], index: 1, kind: output, shape index: {}]
  $region1: #{tile.9} parent=0
    #allocation0 [shape = 'u8[4096]{0}', space=vmem, size = 0x1000, scoped, tag = 'scoped mem for output reshape']
    #allocation1 [shape = 'u8[4096]{0}', space=vmem, size = 0x1000, scoped, tag = 'scoped mem for input reshape']
    %s3 = ssub.s32 16, 1
    %v4 = vld [vmem:[%s0] sm:%s3]
    %5 = vst [vmem:[#allocation1] sm:%s3] %v4
    %v6 = vld [vmem:[#allocation1] sm:$0x1]
    %vm7 = vcmask 64512
    %8 = vst.msk [vmem:[#allocation0] sm:$0x1] %vm7, %v6
    %s9 = scalar_lea.vmem [#allocation1], 3
    %v10 = vld [vmem:[%s9] sm:$0x1]
    %11 = vrot.lane.b32.xlu0 %v10, 24
    %v12 = vpop.permute.xlu0 %11
    %vm13 = vcmask 261312
    %14 = vst.msk [vmem:[#allocation0] sm:$0x1] %vm13, %v12
    %s15 = scalar_lea.vmem [#allocation1], 2
    %v16 = vld [vmem:[%s15] sm:$0x1]
    %17 = vrot.lane.b32.xlu0 %v16, 16
    %v18 = vpop.permute.xlu0 %17
    %vm19 = vcmask 195712
    %20 = vst.msk [vmem:[#allocation0] sm:$0x1] %vm19, %v18
    %s21 = scalar_lea.vmem [#allocation1], 1
    %v22 = vld [vmem:[%s21] sm:$0x1]
    %23 = vrot.lane.b32.xlu0 %v22, 8
    %v24 = vpop.permute.xlu0 %23
    %vm25 = vcmask 130112
    %26 = vst.msk [vmem:[#allocation0] sm:$0x1] %vm25, %v24
    %s28 = ssub.s32 2, 1
    %v29 = vld [vmem:[#allocation0] sm:%s28]
    %s31 = ssub.s32 2, 1
    %32 = vst [vmem:[%s1] sm:%s31] %v29

// kernel: agisnet_block_forward.1
$region0: #{agisnet_block_forward.1}
  #allocation0 [shape = 'u32[]', space=smem, size = 0x4, offset = 0x4, fixed_abs, tag = 'smem constant byte address 0x4 - core index']
  #allocation1 [shape = 'u32[72,128]{1,0:T(1,128)}', space=vmem, size = 0x9000, scoped, tag = 'internal scratch']
  %s0 = inlined_call_operand.vmem [shape: f32[128,145], index: 0, kind: input, shape index: {}]
  %s1 = inlined_call_operand.vmem [shape: f32[145,32], index: 1, kind: input, shape index: {}]
  %s2 = inlined_call_operand.vmem [shape: f32[216,32], index: 2, kind: input, shape index: {}]
  %s3 = inlined_call_operand.vmem [shape: f32[1,32], index: 3, kind: input, shape index: {}]
  %s4 = inlined_call_operand.vmem [shape: f32[128,128], index: 4, kind: output, shape index: {}]
  %s5 = sld [smem:[#allocation0]]
  $region26: #{agisnet_block_forward.1} parent=0
    _
  %s7 = ssub.s32 1, %s5
  %s8 = scalar_select 0, %s7, %s5
  // Predicated region
  $region2: #{agisnet_block_forward.1} parent=0 // pred_check
    _
  $region3: #{agisnet_block_forward.1} parent=0 // pred_check_branch
    %10 = sbr.rel (0) target = $region5
  $region4: #{agisnet_block_forward.1} parent=0 // pred_region
    _
  $region5: #{agisnet_block_forward.1} parent=0 // pred_fallthru
    _
  // Predicated region
  $region6: #{agisnet_block_forward.1} parent=0 // pred_check
    _
  $region7: #{agisnet_block_forward.1} parent=0 // pred_check_branch
    %12 = sbr.rel (0) target = $region9
  $region8: #{agisnet_block_forward.1} parent=0 // pred_region
    _
  $region9: #{agisnet_block_forward.1} parent=0 // pred_fallthru
    _
  // Predicated region
  $region10: #{agisnet_block_forward.1} parent=0 // pred_check
    _
  $region11: #{agisnet_block_forward.1} parent=0 // pred_check_branch
    %14 = sbr.rel (0) target = $region13
  $region12: #{agisnet_block_forward.1} parent=0 // pred_region
    _
  $region13: #{agisnet_block_forward.1} parent=0 // pred_fallthru
    _
  // Predicated region
  $region14: #{agisnet_block_forward.1} parent=0 // pred_check
    _
  $region15: #{agisnet_block_forward.1} parent=0 // pred_check_branch
    %16 = sbr.rel (0) target = $region17
  $region16: #{agisnet_block_forward.1} parent=0 // pred_region
    _
  $region17: #{agisnet_block_forward.1} parent=0 // pred_fallthru
    _
  %v17 = vld [vmem:[%s0] sm:$0xff]
  %v18 = vld [vmem:[%s0 + $0x8] sm:$0xff]
  %v19 = vld [vmem:[%s0 + $0x10] sm:$0xff]
  %v20 = vld [vmem:[%s0 + $0x18] sm:$0xff]
  %v21 = vld [vmem:[%s0 + $0x20] sm:$0xff]
  %v22 = vld [vmem:[%s0 + $0x28] sm:$0xff]
  %v23 = vld [vmem:[%s0 + $0x30] sm:$0xff]
  %v24 = vld [vmem:[%s0 + $0x38] sm:$0xff]
  %v25 = vld [vmem:[%s0 + $0x40] sm:$0xff]
  %v26 = vld [vmem:[%s0 + $0x48] sm:$0xff]
  %v27 = vld [vmem:[%s0 + $0x50] sm:$0xff]
  %v28 = vld [vmem:[%s0 + $0x58] sm:$0xff]
  %v29 = vld [vmem:[%s0 + $0x60] sm:$0xff]
  %v30 = vld [vmem:[%s0 + $0x68] sm:$0xff]
  %v31 = vld [vmem:[%s0 + $0x70] sm:$0xff]
  %v32 = vld [vmem:[%s0 + $0x78] sm:$0xff]
  %v33 = vld [vmem:[%s0 + $0x80] sm:$0xff]
  %v34 = vld [vmem:[%s0 + $0x88] sm:$0xff]
  %v35 = vld [vmem:[%s0 + $0x90] sm:$0xff]
  %v36 = vld [vmem:[%s0 + $0x98] sm:$0xff]
  %v37 = vld [vmem:[%s0 + $0xa0] sm:$0xff]
  %v38 = vld [vmem:[%s0 + $0xa8] sm:$0xff]
  %v39 = vld [vmem:[%s0 + $0xb0] sm:$0xff]
  %v40 = vld [vmem:[%s0 + $0xb8] sm:$0xff]
  %v41 = vld [vmem:[%s0 + $0xc0] sm:$0xff]
  %v42 = vld [vmem:[%s0 + $0xc8] sm:$0xff]
  %v43 = vld [vmem:[%s0 + $0xd0] sm:$0xff]
  %v44 = vld [vmem:[%s0 + $0xd8] sm:$0xff]
  %v45 = vld [vmem:[%s0 + $0xe0] sm:$0xff]
  %v46 = vld [vmem:[%s0 + $0xe8] sm:$0xff]
  %v47 = vld [vmem:[%s0 + $0xf0] sm:$0xff]
  %v48 = vld [vmem:[%s0 + $0xf8] sm:$0xff]
  %vm49 = vcmp.ge.f32.partialorder %v17, 0.0
  %vm50 = vcmp.ge.f32.partialorder %v18, 0.0
  %vm51 = vcmp.ge.f32.partialorder %v19, 0.0
  %vm52 = vcmp.ge.f32.partialorder %v20, 0.0
  %vm53 = vcmp.ge.f32.partialorder %v21, 0.0
  %vm54 = vcmp.ge.f32.partialorder %v22, 0.0
  %vm55 = vcmp.ge.f32.partialorder %v23, 0.0
  %vm56 = vcmp.ge.f32.partialorder %v24, 0.0
  %vm57 = vcmp.ge.f32.partialorder %v25, 0.0
  %vm58 = vcmp.ge.f32.partialorder %v26, 0.0
  %vm59 = vcmp.ge.f32.partialorder %v27, 0.0
  %vm60 = vcmp.ge.f32.partialorder %v28, 0.0
  %vm61 = vcmp.ge.f32.partialorder %v29, 0.0
  %vm62 = vcmp.ge.f32.partialorder %v30, 0.0
  %vm63 = vcmp.ge.f32.partialorder %v31, 0.0
  %vm64 = vcmp.ge.f32.partialorder %v32, 0.0
  %vm65 = vcmp.ge.f32.partialorder %v33, 0.0
  %vm66 = vcmp.ge.f32.partialorder %v34, 0.0
  %vm67 = vcmp.ge.f32.partialorder %v35, 0.0
  %vm68 = vcmp.ge.f32.partialorder %v36, 0.0
  %vm69 = vcmp.ge.f32.partialorder %v37, 0.0
  %vm70 = vcmp.ge.f32.partialorder %v38, 0.0
  %vm71 = vcmp.ge.f32.partialorder %v39, 0.0
  %vm72 = vcmp.ge.f32.partialorder %v40, 0.0
  %vm73 = vcmp.ge.f32.partialorder %v41, 0.0
  %vm74 = vcmp.ge.f32.partialorder %v42, 0.0
  %vm75 = vcmp.ge.f32.partialorder %v43, 0.0
  %vm76 = vcmp.ge.f32.partialorder %v44, 0.0
  %vm77 = vcmp.ge.f32.partialorder %v45, 0.0
  %vm78 = vcmp.ge.f32.partialorder %v46, 0.0
  %vm79 = vcmp.ge.f32.partialorder %v47, 0.0
  %vm80 = vcmp.ge.f32.partialorder %v48, 0.0
  %v81 = vmul.f32 %v17, 0.2
  %v82 = vmul.f32 %v18, 0.2
  %v83 = vmul.f32 %v19, 0.2
  %v84 = vmul.f32 %v20, 0.2
  %v85 = vmul.f32 %v21, 0.2
  %v86 = vmul.f32 %v22, 0.2
  %v87 = vmul.f32 %v23, 0.2
  %v88 = vmul.f32 %v24, 0.2
  %v89 = vmul.f32 %v25, 0.2
  %v90 = vmul.f32 %v26, 0.2
  %v91 = vmul.f32 %v27, 0.2
  %v92 = vmul.f32 %v28, 0.2
  %v93 = vmul.f32 %v29, 0.2
  %v94 = vmul.f32 %v30, 0.2
  %v95 = vmul.f32 %v31, 0.2
  %v96 = vmul.f32 %v32, 0.2
  %v97 = vmul.f32 %v33, 0.2
  %v98 = vmul.f32 %v34, 0.2
  %v99 = vmul.f32 %v35, 0.2
  %v100 = vmul.f32 %v36, 0.2
  %v101 = vmul.f32 %v37, 0.2
  %v102 = vmul.f32 %v38, 0.2
  %v103 = vmul.f32 %v39, 0.2
  %v104 = vmul.f32 %v40, 0.2
  %v105 = vmul.f32 %v41, 0.2
  %v106 = vmul.f32 %v42, 0.2
  %v107 = vmul.f32 %v43, 0.2
  %v108 = vmul.f32 %v44, 0.2
  %v109 = vmul.f32 %v45, 0.2
  %v110 = vmul.f32 %v46, 0.2
  %v111 = vmul.f32 %v47, 0.2
  %v112 = vmul.f32 %v48, 0.2
  %v113 = vsel %vm49, %v17, %v81
  %v114 = vsel %vm50, %v18, %v82
  %v115 = vsel %vm51, %v19, %v83
  %v116 = vsel %vm52, %v20, %v84
  %v117 = vsel %vm53, %v21, %v85
  %v118 = vsel %vm54, %v22, %v86
  %v119 = vsel %vm55, %v23, %v87
  %v120 = vsel %vm56, %v24, %v88
  %v121 = vsel %vm57, %v25, %v89
  %v122 = vsel %vm58, %v26, %v90
  %v123 = vsel %vm59, %v27, %v91
  %v124 = vsel %vm60, %v28, %v92
  %v125 = vsel %vm61, %v29, %v93
  %v126 = vsel %vm62, %v30, %v94
  %v127 = vsel %vm63, %v31, %v95
  %v128 = vsel %vm64, %v32, %v96
  %v129 = vsel %vm65, %v33, %v97
  %v130 = vsel %vm66, %v34, %v98
  %v131 = vsel %vm67, %v35, %v99
  %v132 = vsel %vm68, %v36, %v100
  %v133 = vsel %vm69, %v37, %v101
  %v134 = vsel %vm70, %v38, %v102
  %v135 = vsel %vm71, %v39, %v103
  %v136 = vsel %vm72, %v40, %v104
  %v137 = vsel %vm73, %v41, %v105
  %v138 = vsel %vm74, %v42, %v106
  %v139 = vsel %vm75, %v43, %v107
  %v140 = vsel %vm76, %v44, %v108
  %v141 = vsel %vm77, %v45, %v109
  %v142 = vsel %vm78, %v46, %v110
  %v143 = vsel %vm79, %v47, %v111
  %v144 = vsel %vm80, %v48, %v112
  %v145 = vld [vmem:[%s1] sm:$0xff]
  %v146 = vld [vmem:[%s1 + $0x8] sm:$0xff]
  %v147 = vld [vmem:[%s1 + $0x10] sm:$0xff]
  %v148 = vld [vmem:[%s1 + $0x18] sm:$0xff]
  %v149 = vld [vmem:[%s1 + $0x20] sm:$0xff]
  %v150 = vld [vmem:[%s1 + $0x28] sm:$0xff]
  %v151 = vld [vmem:[%s1 + $0x30] sm:$0xff]
  %v152 = vld [vmem:[%s1 + $0x38] sm:$0xff]
  %v153 = vld [vmem:[%s1 + $0x40] sm:$0xff]
  %v154 = vld [vmem:[%s1 + $0x48] sm:$0xff]
  %v155 = vld [vmem:[%s1 + $0x50] sm:$0xff]
  %v156 = vld [vmem:[%s1 + $0x58] sm:$0xff]
  %v157 = vld [vmem:[%s1 + $0x60] sm:$0xff]
  %v158 = vld [vmem:[%s1 + $0x68] sm:$0xff]
  %v159 = vld [vmem:[%s1 + $0x70] sm:$0xff]
  %v160 = vld [vmem:[%s1 + $0x78] sm:$0xff]
  %v161 = vld [vmem:[%s1 + $0x80] sm:$0xff]
  %v162 = vld [vmem:[%s1 + $0x88] sm:$0xff]
  %v163 = vld [vmem:[%s1 + $0x90] sm:$0x1]
  %vm164 = vcmask 138240
  %v166 = vsel %vm164, %v114, 0
  %v169 = vsel %vm164, %v116, 0
  %v172 = vsel %vm164, %v118, 0
  %v175 = vsel %vm164, %v120, 0
  %v178 = vsel %vm164, %v122, 0
  %v181 = vsel %vm164, %v124, 0
  %v184 = vsel %vm164, %v126, 0
  %v187 = vsel %vm164, %v128, 0
  %v190 = vsel %vm164, %v130, 0
  %v193 = vsel %vm164, %v132, 0
  %v196 = vsel %vm164, %v134, 0
  %v199 = vsel %vm164, %v136, 0
  %v202 = vsel %vm164, %v138, 0
  %v205 = vsel %vm164, %v140, 0
  %v208 = vsel %vm164, %v142, 0
  %v211 = vsel %vm164, %v144, 0
  %vm213 = vcmask 1040384
  %v215 = vsel %vm213, %v163, 0
  %217 = vmatpush.msra.mxu0 %v160
  %218 = vmatpush.msra.mxu0 %v159
  %219 = vmatpush.msra.mxu0 %v158
  %220 = vmatpush.msra.mxu0 %v157
  %221 = vmatpush.msra.mxu0 %v156
  %222 = vmatpush.msra.mxu0 %v155
  %223 = vmatpush.msra.mxu0 %v154
  %224 = vmatpush.msra.mxu0 %v153
  %225 = vmatpush.msra.mxu0 %v152
  %226 = vmatpush.msra.mxu0 %v151
  %227 = vmatpush.msra.mxu0 %v150
  %228 = vmatpush.msra.mxu0 %v149
  %229 = vmatpush.msra.mxu0 %v148
  %230 = vmatpush.msra.mxu0 %v147
  %231 = vmatpush.msra.mxu0 %v146
  %232 = vmatpush.msra.mxu0 %v145
  %233 = vmatmul.f32.gmra.mxu0 %v113
  %v234 = vpop.f32.mrf.mxu0
  %v235 = vadd.f32 0.0, %v234
  %236 = vmatmul.f32.gmra.mxu0 %v115
  %v237 = vpop.f32.mrf.mxu0
  %v238 = vadd.f32 0.0, %v237
  %239 = vmatmul.f32.gmra.mxu0 %v117
  %v240 = vpop.f32.mrf.mxu0
  %v241 = vadd.f32 0.0, %v240
  %242 = vmatmul.f32.gmra.mxu0 %v119
  %v243 = vpop.f32.mrf.mxu0
  %v244 = vadd.f32 0.0, %v243
  %245 = vmatmul.f32.gmra.mxu0 %v121
  %v246 = vpop.f32.mrf.mxu0
  %v247 = vadd.f32 0.0, %v246
  %248 = vmatmul.f32.gmra.mxu0 %v123
  %v249 = vpop.f32.mrf.mxu0
  %v250 = vadd.f32 0.0, %v249
  %251 = vmatmul.f32.gmra.mxu0 %v125
  %v252 = vpop.f32.mrf.mxu0
  %v253 = vadd.f32 0.0, %v252
  %254 = vmatmul.f32.gmra.mxu0 %v127
  %v255 = vpop.f32.mrf.mxu0
  %v256 = vadd.f32 0.0, %v255
  %257 = vmatmul.f32.gmra.mxu0 %v129
  %v258 = vpop.f32.mrf.mxu0
  %v259 = vadd.f32 0.0, %v258
  %260 = vmatmul.f32.gmra.mxu0 %v131
  %v261 = vpop.f32.mrf.mxu0
  %v262 = vadd.f32 0.0, %v261
  %263 = vmatmul.f32.gmra.mxu0 %v133
  %v264 = vpop.f32.mrf.mxu0
  %v265 = vadd.f32 0.0, %v264
  %266 = vmatmul.f32.gmra.mxu0 %v135
  %v267 = vpop.f32.mrf.mxu0
  %v268 = vadd.f32 0.0, %v267
  %269 = vmatmul.f32.gmra.mxu0 %v137
  %v270 = vpop.f32.mrf.mxu0
  %v271 = vadd.f32 0.0, %v270
  %272 = vmatmul.f32.gmra.mxu0 %v139
  %v273 = vpop.f32.mrf.mxu0
  %v274 = vadd.f32 0.0, %v273
  %275 = vmatmul.f32.gmra.mxu0 %v141
  %v276 = vpop.f32.mrf.mxu0
  %v277 = vadd.f32 0.0, %v276
  %278 = vmatmul.f32.gmra.mxu0 %v143
  %v279 = vpop.f32.mrf.mxu0
  %v280 = vadd.f32 0.0, %v279
  %281 = vdwg.mxu0
  %282 = vmatpush.msra.mxu0 0.0
  %283 = vmatpush.msra.mxu0 0.0
  %284 = vmatpush.msra.mxu0 0.0
  %285 = vmatpush.msra.mxu0 0.0
  %286 = vmatpush.msra.mxu0 0.0
  %287 = vmatpush.msra.mxu0 0.0
  %288 = vmatpush.msra.mxu0 0.0
  %289 = vmatpush.msra.mxu0 0.0
  %290 = vmatpush.msra.mxu0 0.0
  %291 = vmatpush.msra.mxu0 0.0
  %292 = vmatpush.msra.mxu0 0.0
  %293 = vmatpush.msra.mxu0 0.0
  %294 = vmatpush.msra.mxu0 0.0
  %295 = vmatpush.msra.mxu0 %v215
  %296 = vmatpush.msra.mxu0 %v162
  %297 = vmatpush.msra.mxu0 %v161
  %298 = vmatmul.f32.gmra.mxu0 %v166
  %v299 = vpop.f32.mrf.mxu0
  %v300 = vadd.f32 %v235, %v299
  %301 = vmatmul.f32.gmra.mxu0 %v169
  %v302 = vpop.f32.mrf.mxu0
  %v303 = vadd.f32 %v238, %v302
  %304 = vmatmul.f32.gmra.mxu0 %v172
  %v305 = vpop.f32.mrf.mxu0
  %v306 = vadd.f32 %v241, %v305
  %307 = vmatmul.f32.gmra.mxu0 %v175
  %v308 = vpop.f32.mrf.mxu0
  %v309 = vadd.f32 %v244, %v308
  %310 = vmatmul.f32.gmra.mxu0 %v178
  %v311 = vpop.f32.mrf.mxu0
  %v312 = vadd.f32 %v247, %v311
  %313 = vmatmul.f32.gmra.mxu0 %v181
  %v314 = vpop.f32.mrf.mxu0
  %v315 = vadd.f32 %v250, %v314
  %316 = vmatmul.f32.gmra.mxu0 %v184
  %v317 = vpop.f32.mrf.mxu0
  %v318 = vadd.f32 %v253, %v317
  %319 = vmatmul.f32.gmra.mxu0 %v187
  %v320 = vpop.f32.mrf.mxu0
  %v321 = vadd.f32 %v256, %v320
  %322 = vmatmul.f32.gmra.mxu0 %v190
  %v323 = vpop.f32.mrf.mxu0
  %v324 = vadd.f32 %v259, %v323
  %325 = vmatmul.f32.gmra.mxu0 %v193
  %v326 = vpop.f32.mrf.mxu0
  %v327 = vadd.f32 %v262, %v326
  %328 = vmatmul.f32.gmra.mxu0 %v196
  %v329 = vpop.f32.mrf.mxu0
  %v330 = vadd.f32 %v265, %v329
  %331 = vmatmul.f32.gmra.mxu0 %v199
  %v332 = vpop.f32.mrf.mxu0
  %v333 = vadd.f32 %v268, %v332
  %334 = vmatmul.f32.gmra.mxu0 %v202
  %v335 = vpop.f32.mrf.mxu0
  %v336 = vadd.f32 %v271, %v335
  %337 = vmatmul.f32.gmra.mxu0 %v205
  %v338 = vpop.f32.mrf.mxu0
  %v339 = vadd.f32 %v274, %v338
  %340 = vmatmul.f32.gmra.mxu0 %v208
  %v341 = vpop.f32.mrf.mxu0
  %v342 = vadd.f32 %v277, %v341
  %343 = vmatmul.f32.gmra.mxu0 %v211
  %v344 = vpop.f32.mrf.mxu0
  %v345 = vadd.f32 %v280, %v344
  %346 = vdwg.mxu0
  %v347 = vmax.f32 %v300, 0.0
  %v348 = vmax.f32 %v303, 0.0
  %v349 = vmax.f32 %v306, 0.0
  %v350 = vmax.f32 %v309, 0.0
  %v351 = vmax.f32 %v312, 0.0
  %v352 = vmax.f32 %v315, 0.0
  %v353 = vmax.f32 %v318, 0.0
  %v354 = vmax.f32 %v321, 0.0
  %v355 = vmax.f32 %v324, 0.0
  %v356 = vmax.f32 %v327, 0.0
  %v357 = vmax.f32 %v330, 0.0
  %v358 = vmax.f32 %v333, 0.0
  %v359 = vmax.f32 %v336, 0.0
  %v360 = vmax.f32 %v339, 0.0
  %v361 = vmax.f32 %v342, 0.0
  %v362 = vmax.f32 %v345, 0.0
  %v380 = vrot.slane 0.0, 7
  %v381 = vrot.slane %v347, 7
  %v382 = vrot.slane %v348, 7
  %v383 = vrot.slane %v349, 7
  %v384 = vrot.slane %v350, 7
  %v385 = vrot.slane %v351, 7
  %v386 = vrot.slane %v352, 7
  %v387 = vrot.slane %v353, 7
  %v388 = vrot.slane %v354, 7
  %v389 = vrot.slane %v355, 7
  %v390 = vrot.slane %v356, 7
  %v391 = vrot.slane %v357, 7
  %v392 = vrot.slane %v358, 7
  %v393 = vrot.slane %v359, 7
  %v394 = vrot.slane %v360, 7
  %v395 = vrot.slane %v361, 7
  %v396 = vrot.slane %v362, 7
  %v414 = vsel %vm213, 0.0, %v380
  %v415 = vsel %vm213, 0.0, %v381
  %v416 = vsel %vm213, 0.0, %v382
  %v417 = vsel %vm213, 0.0, %v383
  %v418 = vsel %vm213, 0.0, %v384
  %v419 = vsel %vm213, 0.0, %v385
  %v420 = vsel %vm213, 0.0, %v386
  %v421 = vsel %vm213, 0.0, %v387
  %v422 = vsel %vm213, 0.0, %v388
  %v423 = vsel %vm213, 0.0, %v389
  %v424 = vsel %vm213, 0.0, %v390
  %v425 = vsel %vm213, 0.0, %v391
  %v426 = vsel %vm213, 0.0, %v392
  %v427 = vsel %vm213, 0.0, %v393
  %v428 = vsel %vm213, 0.0, %v394
  %v429 = vsel %vm213, 0.0, %v395
  %v430 = vsel %vm213, 0.0, %v396
  %v431 = vsel %vm213, %v380, 0.0
  %v432 = vsel %vm213, %v381, 0.0
  %v433 = vsel %vm213, %v382, 0.0
  %v434 = vsel %vm213, %v383, 0.0
  %v435 = vsel %vm213, %v384, 0.0
  %v436 = vsel %vm213, %v385, 0.0
  %v437 = vsel %vm213, %v386, 0.0
  %v438 = vsel %vm213, %v387, 0.0
  %v439 = vsel %vm213, %v388, 0.0
  %v440 = vsel %vm213, %v389, 0.0
  %v441 = vsel %vm213, %v390, 0.0
  %v442 = vsel %vm213, %v391, 0.0
  %v443 = vsel %vm213, %v392, 0.0
  %v444 = vsel %vm213, %v393, 0.0
  %v445 = vsel %vm213, %v394, 0.0
  %v446 = vsel %vm213, %v395, 0.0
  %v447 = vsel %vm213, %v396, 0.0
  %vm478 = vcmask 1046528
  %v479 = vrot.slane %v414, 1
  %v480 = vrot.slane %v431, 1
  %v481 = vsel %vm478, %v479, %v480
  %v482 = vrot.slane %v415, 1
  %v483 = vrot.slane %v432, 1
  %v484 = vsel %vm478, %v482, %v483
  %v485 = vrot.slane %v416, 1
  %v486 = vrot.slane %v433, 1
  %v487 = vsel %vm478, %v485, %v486
  %v488 = vrot.slane %v417, 1
  %v489 = vrot.slane %v434, 1
  %v490 = vsel %vm478, %v488, %v489
  %v491 = vrot.slane %v418, 1
  %v492 = vrot.slane %v435, 1
  %v493 = vsel %vm478, %v491, %v492
  %v494 = vrot.slane %v419, 1
  %v495 = vrot.slane %v436, 1
  %v496 = vsel %vm478, %v494, %v495
  %v497 = vrot.slane %v420, 1
  %v498 = vrot.slane %v437, 1
  %v499 = vsel %vm478, %v497, %v498
  %v500 = vrot.slane %v421, 1
  %v501 = vrot.slane %v438, 1
  %v502 = vsel %vm478, %v500, %v501
  %v503 = vrot.slane %v423, 1
  %v504 = vrot.slane %v440, 1
  %v505 = vsel %vm478, %v503, %v504
  %v506 = vrot.slane %v424, 1
  %v507 = vrot.slane %v441, 1
  %v508 = vsel %vm478, %v506, %v507
  %v509 = vrot.slane %v425, 1
  %v510 = vrot.slane %v442, 1
  %v511 = vsel %vm478, %v509, %v510
  %v512 = vrot.slane %v426, 1
  %v513 = vrot.slane %v443, 1
  %v514 = vsel %vm478, %v512, %v513
  %v515 = vrot.slane %v427, 1
  %v516 = vrot.slane %v444, 1
  %v517 = vsel %vm478, %v515, %v516
  %v518 = vrot.slane %v428, 1
  %v519 = vrot.slane %v445, 1
  %v520 = vsel %vm478, %v518, %v519
  %v521 = vrot.slane %v429, 1
  %v522 = vrot.slane %v446, 1
  %v523 = vsel %vm478, %v521, %v522
  %524 = vrot.lane.b32.xlu0 %v481, 24
  %v525 = vpop.permute.xlu0 %524
  %526 = vrot.lane.b32.xlu0 %v484, 24
  %v527 = vpop.permute.xlu0 %526
  %528 = vrot.lane.b32.xlu0 %v487, 24
  %v529 = vpop.permute.xlu0 %528
  %530 = vrot.lane.b32.xlu0 %v490, 24
  %v531 = vpop.permute.xlu0 %530
  %532 = vrot.lane.b32.xlu0 %v493, 24
  %v533 = vpop.permute.xlu0 %532
  %534 = vrot.lane.b32.xlu0 %v496, 24
  %v535 = vpop.permute.xlu0 %534
  %536 = vrot.lane.b32.xlu0 %v499, 24
  %v537 = vpop.permute.xlu0 %536
  %538 = vrot.lane.b32.xlu0 %v502, 24
  %v539 = vpop.permute.xlu0 %538
  %540 = vrot.lane.b32.xlu0 %v505, 24
  %v541 = vpop.permute.xlu0 %540
  %542 = vrot.lane.b32.xlu0 %v508, 24
  %v543 = vpop.permute.xlu0 %542
  %544 = vrot.lane.b32.xlu0 %v511, 24
  %v545 = vpop.permute.xlu0 %544
  %546 = vrot.lane.b32.xlu0 %v514, 24
  %v547 = vpop.permute.xlu0 %546
  %548 = vrot.lane.b32.xlu0 %v517, 24
  %v549 = vpop.permute.xlu0 %548
  %550 = vrot.lane.b32.xlu0 %v520, 24
  %v551 = vpop.permute.xlu0 %550
  %552 = vrot.lane.b32.xlu0 %v523, 24
  %v553 = vpop.permute.xlu0 %552
  %vm569 = vcmask 1045504
  %v570 = vrot.slane %v414, 2
  %v571 = vrot.slane %v431, 2
  %v572 = vsel %vm569, %v570, %v571
  %v573 = vrot.slane %v415, 2
  %v574 = vrot.slane %v432, 2
  %v575 = vsel %vm569, %v573, %v574
  %v576 = vrot.slane %v416, 2
  %v577 = vrot.slane %v433, 2
  %v578 = vsel %vm569, %v576, %v577
  %v579 = vrot.slane %v417, 2
  %v580 = vrot.slane %v434, 2
  %v581 = vsel %vm569, %v579, %v580
  %v582 = vrot.slane %v418, 2
  %v583 = vrot.slane %v435, 2
  %v584 = vsel %vm569, %v582, %v583
  %v585 = vrot.slane %v419, 2
  %v586 = vrot.slane %v436, 2
  %v587 = vsel %vm569, %v585, %v586
  %v588 = vrot.slane %v420, 2
  %v589 = vrot.slane %v437, 2
  %v590 = vsel %vm569, %v588, %v589
  %v591 = vrot.slane %v421, 2
  %v592 = vrot.slane %v438, 2
  %v593 = vsel %vm569, %v591, %v592
  %v594 = vrot.slane %v423, 2
  %v595 = vrot.slane %v440, 2
  %v596 = vsel %vm569, %v594, %v595
  %v597 = vrot.slane %v424, 2
  %v598 = vrot.slane %v441, 2
  %v599 = vsel %vm569, %v597, %v598
  %v600 = vrot.slane %v425, 2
  %v601 = vrot.slane %v442, 2
  %v602 = vsel %vm569, %v600, %v601
  %v603 = vrot.slane %v426, 2
  %v604 = vrot.slane %v443, 2
  %v605 = vsel %vm569, %v603, %v604
  %v606 = vrot.slane %v427, 2
  %v607 = vrot.slane %v444, 2
  %v608 = vsel %vm569, %v606, %v607
  %v609 = vrot.slane %v428, 2
  %v610 = vrot.slane %v445, 2
  %v611 = vsel %vm569, %v609, %v610
  %v612 = vrot.slane %v429, 2
  %v613 = vrot.slane %v446, 2
  %v614 = vsel %vm569, %v612, %v613
  %615 = vrot.lane.b32.xlu0 %v572, 48
  %v616 = vpop.permute.xlu0 %615
  %617 = vrot.lane.b32.xlu0 %v575, 48
  %v618 = vpop.permute.xlu0 %617
  %619 = vrot.lane.b32.xlu0 %v578, 48
  %v620 = vpop.permute.xlu0 %619
  %621 = vrot.lane.b32.xlu0 %v581, 48
  %v622 = vpop.permute.xlu0 %621
  %623 = vrot.lane.b32.xlu0 %v584, 48
  %v624 = vpop.permute.xlu0 %623
  %625 = vrot.lane.b32.xlu0 %v587, 48
  %v626 = vpop.permute.xlu0 %625
  %627 = vrot.lane.b32.xlu0 %v590, 48
  %v628 = vpop.permute.xlu0 %627
  %629 = vrot.lane.b32.xlu0 %v593, 48
  %v630 = vpop.permute.xlu0 %629
  %631 = vrot.lane.b32.xlu0 %v596, 48
  %v632 = vpop.permute.xlu0 %631
  %633 = vrot.lane.b32.xlu0 %v599, 48
  %v634 = vpop.permute.xlu0 %633
  %635 = vrot.lane.b32.xlu0 %v602, 48
  %v636 = vpop.permute.xlu0 %635
  %637 = vrot.lane.b32.xlu0 %v605, 48
  %v638 = vpop.permute.xlu0 %637
  %639 = vrot.lane.b32.xlu0 %v608, 48
  %v640 = vpop.permute.xlu0 %639
  %641 = vrot.lane.b32.xlu0 %v611, 48
  %v642 = vpop.permute.xlu0 %641
  %643 = vrot.lane.b32.xlu0 %v614, 48
  %v644 = vpop.permute.xlu0 %643
  %662 = vrot.lane.b32.xlu0 %v415, 72
  %v663 = vpop.permute.xlu0 %662
  %664 = vrot.lane.b32.xlu0 %v416, 72
  %v665 = vpop.permute.xlu0 %664
  %666 = vrot.lane.b32.xlu0 %v417, 72
  %v667 = vpop.permute.xlu0 %666
  %668 = vrot.lane.b32.xlu0 %v418, 72
  %v669 = vpop.permute.xlu0 %668
  %670 = vrot.lane.b32.xlu0 %v419, 72
  %v671 = vpop.permute.xlu0 %670
  %672 = vrot.lane.b32.xlu0 %v420, 72
  %v673 = vpop.permute.xlu0 %672
  %674 = vrot.lane.b32.xlu0 %v421, 72
  %v675 = vpop.permute.xlu0 %674
  %676 = vrot.lane.b32.xlu0 %v422, 72
  %v677 = vpop.permute.xlu0 %676
  %678 = vrot.lane.b32.xlu0 %v423, 72
  %v679 = vpop.permute.xlu0 %678
  %680 = vrot.lane.b32.xlu0 %v424, 72
  %v681 = vpop.permute.xlu0 %680
  %682 = vrot.lane.b32.xlu0 %v425, 72
  %v683 = vpop.permute.xlu0 %682
  %684 = vrot.lane.b32.xlu0 %v426, 72
  %v685 = vpop.permute.xlu0 %684
  %686 = vrot.lane.b32.xlu0 %v427, 72
  %v687 = vpop.permute.xlu0 %686
  %688 = vrot.lane.b32.xlu0 %v428, 72
  %v689 = vpop.permute.xlu0 %688
  %690 = vrot.lane.b32.xlu0 %v429, 72
  %v691 = vpop.permute.xlu0 %690
  %692 = vrot.lane.b32.xlu0 %v430, 72
  %v693 = vpop.permute.xlu0 %692
  %v712 = vrot.slane %v422, 1
  %v713 = vrot.slane %v439, 1
  %v714 = vsel %vm478, %v712, %v713
  %v715 = vrot.slane %v430, 1
  %v716 = vrot.slane %v447, 1
  %v717 = vsel %vm478, %v715, %v716
  %718 = vrot.lane.b32.xlu0 %v484, 96
  %v719 = vpop.permute.xlu0 %718
  %720 = vrot.lane.b32.xlu0 %v487, 96
  %v721 = vpop.permute.xlu0 %720
  %722 = vrot.lane.b32.xlu0 %v490, 96
  %v723 = vpop.permute.xlu0 %722
  %724 = vrot.lane.b32.xlu0 %v493, 96
  %v725 = vpop.permute.xlu0 %724
  %726 = vrot.lane.b32.xlu0 %v496, 96
  %v727 = vpop.permute.xlu0 %726
  %728 = vrot.lane.b32.xlu0 %v499, 96
  %v729 = vpop.permute.xlu0 %728
  %730 = vrot.lane.b32.xlu0 %v502, 96
  %v731 = vpop.permute.xlu0 %730
  %732 = vrot.lane.b32.xlu0 %v714, 96
  %v733 = vpop.permute.xlu0 %732
  %734 = vrot.lane.b32.xlu0 %v505, 96
  %v735 = vpop.permute.xlu0 %734
  %736 = vrot.lane.b32.xlu0 %v508, 96
  %v737 = vpop.permute.xlu0 %736
  %738 = vrot.lane.b32.xlu0 %v511, 96
  %v739 = vpop.permute.xlu0 %738
  %740 = vrot.lane.b32.xlu0 %v514, 96
  %v741 = vpop.permute.xlu0 %740
  %742 = vrot.lane.b32.xlu0 %v517, 96
  %v743 = vpop.permute.xlu0 %742
  %744 = vrot.lane.b32.xlu0 %v520, 96
  %v745 = vpop.permute.xlu0 %744
  %746 = vrot.lane.b32.xlu0 %v523, 96
  %v747 = vpop.permute.xlu0 %746
  %748 = vrot.lane.b32.xlu0 %v717, 96
  %v749 = vpop.permute.xlu0 %748
  %v766 = vrot.slane %v422, 2
  %v767 = vrot.slane %v439, 2
  %v768 = vsel %vm569, %v766, %v767
  %v769 = vrot.slane %v430, 2
  %v770 = vrot.slane %v447, 2
  %v771 = vsel %vm569, %v769, %v770
  %772 = vrot.lane.b32.xlu0 %v575, 120
  %v773 = vpop.permute.xlu0 %772
  %774 = vrot.lane.b32.xlu0 %v578, 120
  %v775 = vpop.permute.xlu0 %774
  %776 = vrot.lane.b32.xlu0 %v581, 120
  %v777 = vpop.permute.xlu0 %776
  %778 = vrot.lane.b32.xlu0 %v584, 120
  %v779 = vpop.permute.xlu0 %778
  %780 = vrot.lane.b32.xlu0 %v587, 120
  %v781 = vpop.permute.xlu0 %780
  %782 = vrot.lane.b32.xlu0 %v590, 120
  %v783 = vpop.permute.xlu0 %782
  %784 = vrot.lane.b32.xlu0 %v593, 120
  %v785 = vpop.permute.xlu0 %784
  %786 = vrot.lane.b32.xlu0 %v768, 120
  %v787 = vpop.permute.xlu0 %786
  %788 = vrot.lane.b32.xlu0 %v596, 120
  %v789 = vpop.permute.xlu0 %788
  %790 = vrot.lane.b32.xlu0 %v599, 120
  %v791 = vpop.permute.xlu0 %790
  %792 = vrot.lane.b32.xlu0 %v602, 120
  %v793 = vpop.permute.xlu0 %792
  %794 = vrot.lane.b32.xlu0 %v605, 120
  %v795 = vpop.permute.xlu0 %794
  %796 = vrot.lane.b32.xlu0 %v608, 120
  %v797 = vpop.permute.xlu0 %796
  %798 = vrot.lane.b32.xlu0 %v611, 120
  %v799 = vpop.permute.xlu0 %798
  %800 = vrot.lane.b32.xlu0 %v614, 120
  %v801 = vpop.permute.xlu0 %800
  %802 = vrot.lane.b32.xlu0 %v771, 120
  %v803 = vpop.permute.xlu0 %802
  %820 = vrot.lane.b32.xlu0 %v416, 16
  %v821 = vpop.permute.xlu0 %820
  %822 = vrot.lane.b32.xlu0 %v417, 16
  %v823 = vpop.permute.xlu0 %822
  %824 = vrot.lane.b32.xlu0 %v418, 16
  %v825 = vpop.permute.xlu0 %824
  %826 = vrot.lane.b32.xlu0 %v419, 16
  %v827 = vpop.permute.xlu0 %826
  %828 = vrot.lane.b32.xlu0 %v420, 16
  %v829 = vpop.permute.xlu0 %828
  %830 = vrot.lane.b32.xlu0 %v421, 16
  %v831 = vpop.permute.xlu0 %830
  %832 = vrot.lane.b32.xlu0 %v422, 16
  %v833 = vpop.permute.xlu0 %832
  %834 = vrot.lane.b32.xlu0 %v414, 16
  %v835 = vpop.permute.xlu0 %834
  %836 = vrot.lane.b32.xlu0 %v424, 16
  %v837 = vpop.permute.xlu0 %836
  %838 = vrot.lane.b32.xlu0 %v425, 16
  %v839 = vpop.permute.xlu0 %838
  %840 = vrot.lane.b32.xlu0 %v426, 16
  %v841 = vpop.permute.xlu0 %840
  %842 = vrot.lane.b32.xlu0 %v427, 16
  %v843 = vpop.permute.xlu0 %842
  %844 = vrot.lane.b32.xlu0 %v428, 16
  %v845 = vpop.permute.xlu0 %844
  %846 = vrot.lane.b32.xlu0 %v429, 16
  %v847 = vpop.permute.xlu0 %846
  %848 = vrot.lane.b32.xlu0 %v430, 16
  %v849 = vpop.permute.xlu0 %848
  %865 = vrot.lane.b32.xlu0 %v487, 40
  %v866 = vpop.permute.xlu0 %865
  %867 = vrot.lane.b32.xlu0 %v490, 40
  %v868 = vpop.permute.xlu0 %867
  %869 = vrot.lane.b32.xlu0 %v493, 40
  %v870 = vpop.permute.xlu0 %869
  %871 = vrot.lane.b32.xlu0 %v496, 40
  %v872 = vpop.permute.xlu0 %871
  %873 = vrot.lane.b32.xlu0 %v499, 40
  %v874 = vpop.permute.xlu0 %873
  %875 = vrot.lane.b32.xlu0 %v502, 40
  %v876 = vpop.permute.xlu0 %875
  %877 = vrot.lane.b32.xlu0 %v714, 40
  %v878 = vpop.permute.xlu0 %877
  %879 = vrot.lane.b32.xlu0 %v481, 40
  %v880 = vpop.permute.xlu0 %879
  %881 = vrot.lane.b32.xlu0 %v508, 40
  %v882 = vpop.permute.xlu0 %881
  %883 = vrot.lane.b32.xlu0 %v511, 40
  %v884 = vpop.permute.xlu0 %883
  %885 = vrot.lane.b32.xlu0 %v514, 40
  %v886 = vpop.permute.xlu0 %885
  %887 = vrot.lane.b32.xlu0 %v517, 40
  %v888 = vpop.permute.xlu0 %887
  %889 = vrot.lane.b32.xlu0 %v520, 40
  %v890 = vpop.permute.xlu0 %889
  %891 = vrot.lane.b32.xlu0 %v523, 40
  %v892 = vpop.permute.xlu0 %891
  %893 = vrot.lane.b32.xlu0 %v717, 40
  %v894 = vpop.permute.xlu0 %893
  %910 = vrot.lane.b32.xlu0 %v578, 64
  %v911 = vpop.permute.xlu0 %910
  %912 = vrot.lane.b32.xlu0 %v581, 64
  %v913 = vpop.permute.xlu0 %912
  %914 = vrot.lane.b32.xlu0 %v584, 64
  %v915 = vpop.permute.xlu0 %914
  %916 = vrot.lane.b32.xlu0 %v587, 64
  %v917 = vpop.permute.xlu0 %916
  %918 = vrot.lane.b32.xlu0 %v590, 64
  %v919 = vpop.permute.xlu0 %918
  %920 = vrot.lane.b32.xlu0 %v593, 64
  %v921 = vpop.permute.xlu0 %920
  %922 = vrot.lane.b32.xlu0 %v768, 64
  %v923 = vpop.permute.xlu0 %922
  %924 = vrot.lane.b32.xlu0 %v572, 64
  %v925 = vpop.permute.xlu0 %924
  %926 = vrot.lane.b32.xlu0 %v599, 64
  %v927 = vpop.permute.xlu0 %926
  %928 = vrot.lane.b32.xlu0 %v602, 64
  %v929 = vpop.permute.xlu0 %928
  %930 = vrot.lane.b32.xlu0 %v605, 64
  %v931 = vpop.permute.xlu0 %930
  %932 = vrot.lane.b32.xlu0 %v608, 64
  %v933 = vpop.permute.xlu0 %932
  %934 = vrot.lane.b32.xlu0 %v611, 64
  %v935 = vpop.permute.xlu0 %934
  %936 = vrot.lane.b32.xlu0 %v614, 64
  %v937 = vpop.permute.xlu0 %936
  %938 = vrot.lane.b32.xlu0 %v771, 64
  %v939 = vpop.permute.xlu0 %938
  %vm955 = vcmask 195584
  %v956 = vsel %vm955, %v414, %v525
  %v957 = vsel %vm955, %v415, %v527
  %v958 = vsel %vm955, %v416, %v529
  %v959 = vsel %vm955, %v417, %v531
  %v960 = vsel %vm955, %v418, %v533
  %v961 = vsel %vm955, %v419, %v535
  %v962 = vsel %vm955, %v420, %v537
  %v963 = vsel %vm955, %v421, %v539
  %v964 = vsel %vm955, %v423, %v541
  %v965 = vsel %vm955, %v424, %v543
  %v966 = vsel %vm955, %v425, %v545
  %v967 = vsel %vm955, %v426, %v547
  %v968 = vsel %vm955, %v427, %v549
  %v969 = vsel %vm955, %v428, %v551
  %v970 = vsel %vm955, %v429, %v553
  %vm971 = vcmask 392192
  %v972 = vsel %vm971, %v956, %v616
  %v973 = vsel %vm971, %v957, %v618
  %v974 = vsel %vm971, %v958, %v620
  %v975 = vsel %vm971, %v959, %v622
  %v976 = vsel %vm971, %v960, %v624
  %v977 = vsel %vm971, %v961, %v626
  %v978 = vsel %vm971, %v962, %v628
  %v979 = vsel %vm971, %v963, %v630
  %v980 = vsel %vm971, %v964, %v632
  %v981 = vsel %vm971, %v965, %v634
  %v982 = vsel %vm971, %v966, %v636
  %v983 = vsel %vm971, %v967, %v638
  %v984 = vsel %vm971, %v968, %v640
  %v985 = vsel %vm971, %v969, %v642
  %v986 = vsel %vm971, %v970, %v644
  %vm987 = vcmask 588800
  %v988 = vsel %vm987, %v972, %v663
  %v989 = vsel %vm987, %v973, %v665
  %v990 = vsel %vm987, %v974, %v667
  %v991 = vsel %vm987, %v975, %v669
  %v992 = vsel %vm987, %v976, %v671
  %v993 = vsel %vm987, %v977, %v673
  %v994 = vsel %vm987, %v978, %v675
  %v995 = vsel %vm987, %v979, %v677
  %v996 = vsel %vm987, %v972, %v679
  %v997 = vsel %vm987, %v980, %v681
  %v998 = vsel %vm987, %v981, %v683
  %v999 = vsel %vm987, %v982, %v685
  %v1000 = vsel %vm987, %v983, %v687
  %v1001 = vsel %vm987, %v984, %v689
  %v1002 = vsel %vm987, %v985, %v691
  %v1003 = vsel %vm987, %v986, %v693
  %vm1004 = vcmask 785408
  %v1005 = vsel %vm1004, %v988, %v719
  %v1006 = vsel %vm1004, %v989, %v721
  %v1007 = vsel %vm1004, %v990, %v723
  %v1008 = vsel %vm1004, %v991, %v725
  %v1009 = vsel %vm1004, %v992, %v727
  %v1010 = vsel %vm1004, %v993, %v729
  %v1011 = vsel %vm1004, %v994, %v731
  %v1012 = vsel %vm1004, %v995, %v733
  %v1013 = vsel %vm1004, %v996, %v735
  %v1014 = vsel %vm1004, %v997, %v737
  %v1015 = vsel %vm1004, %v998, %v739
  %v1016 = vsel %vm1004, %v999, %v741
  %v1017 = vsel %vm1004, %v1000, %v743
  %v1018 = vsel %vm1004, %v1001, %v745
  %v1019 = vsel %vm1004, %v1002, %v747
  %v1020 = vsel %vm1004, %v1003, %v749
  %vm1021 = vcmask 982016
  %v1022 = vsel %vm1021, %v1005, %v773
  %v1023 = vsel %vm1021, %v1006, %v775
  %v1024 = vsel %vm1021, %v1007, %v777
  %v1025 = vsel %vm1021, %v1008, %v779
  %v1026 = vsel %vm1021, %v1009, %v781
  %v1027 = vsel %vm1021, %v1010, %v783
  %v1028 = vsel %vm1021, %v1011, %v785
  %v1029 = vsel %vm1021, %v1012, %v787
  %v1030 = vsel %vm1021, %v1013, %v789
  %v1031 = vsel %vm1021, %v1014, %v791
  %v1032 = vsel %vm1021, %v1015, %v793
  %v1033 = vsel %vm1021, %v1016, %v795
  %v1034 = vsel %vm1021, %v1017, %v797
  %v1035 = vsel %vm1021, %v1018, %v799
  %v1036 = vsel %vm1021, %v1019, %v801
  %v1037 = vsel %vm1021, %v1020, %v803
  %vm1038 = vcmask 130048
  %v1039 = vsel %vm1038, %v773, %v821
  %v1040 = vsel %vm1038, %v775, %v823
  %v1041 = vsel %vm1038, %v777, %v825
  %v1042 = vsel %vm1038, %v779, %v827
  %v1043 = vsel %vm1038, %v781, %v829
  %v1044 = vsel %vm1038, %v783, %v831
  %v1045 = vsel %vm1038, %v785, %v833
  %v1046 = vsel %vm1038, %v787, %v835
  %v1047 = vsel %vm1038, %v789, %v837
  %v1048 = vsel %vm1038, %v791, %v839
  %v1049 = vsel %vm1038, %v793, %v841
  %v1050 = vsel %vm1038, %v795, %v843
  %v1051 = vsel %vm1038, %v797, %v845
  %v1052 = vsel %vm1038, %v799, %v847
  %v1053 = vsel %vm1038, %v801, %v849
  %v1054 = vsel %vm1038, %v803, %v835
  %vm1055 = vcmask 326656
  %v1056 = vsel %vm1055, %v1039, %v866
  %v1057 = vsel %vm1055, %v1040, %v868
  %v1058 = vsel %vm1055, %v1041, %v870
  %v1059 = vsel %vm1055, %v1042, %v872
  %v1060 = vsel %vm1055, %v1043, %v874
  %v1061 = vsel %vm1055, %v1044, %v876
  %v1062 = vsel %vm1055, %v1045, %v878
  %v1063 = vsel %vm1055, %v1046, %v880
  %v1064 = vsel %vm1055, %v1047, %v882
  %v1065 = vsel %vm1055, %v1048, %v884
  %v1066 = vsel %vm1055, %v1049, %v886
  %v1067 = vsel %vm1055, %v1050, %v888
  %v1068 = vsel %vm1055, %v1051, %v890
  %v1069 = vsel %vm1055, %v1052, %v892
  %v1070 = vsel %vm1055, %v1053, %v894
  %v1071 = vsel %vm1055, %v1054, %v880
  %vm1072 = vcmask 523264
  %v1073 = vsel %vm1072, %v1056, %v911
  %v1074 = vsel %vm1072, %v1057, %v913
  %v1075 = vsel %vm1072, %v1058, %v915
  %v1076 = vsel %vm1072, %v1059, %v917
  %v1077 = vsel %vm1072, %v1060, %v919
  %v1078 = vsel %vm1072, %v1061, %v921
  %v1079 = vsel %vm1072, %v1062, %v923
  %v1080 = vsel %vm1072, %v1063, %v925
  %v1081 = vsel %vm1072, %v1064, %v927
  %v1082 = vsel %vm1072, %v1065, %v929
  %v1083 = vsel %vm1072, %v1066, %v931
  %v1084 = vsel %vm1072, %v1067, %v933
  %v1085 = vsel %vm1072, %v1068, %v935
  %v1086 = vsel %vm1072, %v1069, %v937
  %v1087 = vsel %vm1072, %v1070, %v939
  %v1088 = vsel %vm1072, %v1071, %v925
  %v1089 = vld [vmem:[%s2] sm:$0xff]
  %v1090 = vld [vmem:[%s2 + $0x8] sm:$0xff]
  %v1091 = vld [vmem:[%s2 + $0x10] sm:$0xff]
  %v1092 = vld [vmem:[%s2 + $0x18] sm:$0xff]
  %v1093 = vld [vmem:[%s2 + $0x20] sm:$0xff]
  %v1094 = vld [vmem:[%s2 + $0x28] sm:$0xff]
  %v1095 = vld [vmem:[%s2 + $0x30] sm:$0xff]
  %v1096 = vld [vmem:[%s2 + $0x38] sm:$0xff]
  %v1097 = vld [vmem:[%s2 + $0x40] sm:$0xff]
  %v1098 = vld [vmem:[%s2 + $0x48] sm:$0xff]
  %v1099 = vld [vmem:[%s2 + $0x50] sm:$0xff]
  %v1100 = vld [vmem:[%s2 + $0x58] sm:$0xff]
  %v1101 = vld [vmem:[%s2 + $0x60] sm:$0xff]
  %v1102 = vld [vmem:[%s2 + $0x68] sm:$0xff]
  %v1103 = vld [vmem:[%s2 + $0x70] sm:$0xff]
  %v1104 = vld [vmem:[%s2 + $0x78] sm:$0xff]
  %v1105 = vld [vmem:[%s2 + $0x80] sm:$0xff]
  %v1106 = vld [vmem:[%s2 + $0x88] sm:$0xff]
  %v1107 = vld [vmem:[%s2 + $0x90] sm:$0xff]
  %v1108 = vld [vmem:[%s2 + $0x98] sm:$0xff]
  %v1109 = vld [vmem:[%s2 + $0xa0] sm:$0xff]
  %v1110 = vld [vmem:[%s2 + $0xa8] sm:$0xff]
  %v1111 = vld [vmem:[%s2 + $0xb0] sm:$0xff]
  %v1112 = vld [vmem:[%s2 + $0xb8] sm:$0xff]
  %v1113 = vld [vmem:[%s2 + $0xc0] sm:$0xff]
  %v1114 = vld [vmem:[%s2 + $0xc8] sm:$0xff]
  %v1115 = vld [vmem:[%s2 + $0xd0] sm:$0xff]
  %v1116 = vld [vmem:[%s3] sm:$0x1]
  %v1118 = vperm.slane %v1116, 0
  %vm1120 = vcmask 719872
  %v1122 = vsel %vm1120, %v1073, 0
  %v1125 = vsel %vm1120, %v1074, 0
  %v1128 = vsel %vm1120, %v1075, 0
  %v1131 = vsel %vm1120, %v1076, 0
  %v1134 = vsel %vm1120, %v1077, 0
  %v1137 = vsel %vm1120, %v1078, 0
  %v1140 = vsel %vm1120, %v1079, 0
  %v1143 = vsel %vm1120, %v1080, 0
  %v1146 = vsel %vm1120, %v1081, 0
  %v1149 = vsel %vm1120, %v1082, 0
  %v1152 = vsel %vm1120, %v1083, 0
  %v1155 = vsel %vm1120, %v1084, 0
  %v1158 = vsel %vm1120, %v1085, 0
  %v1161 = vsel %vm1120, %v1086, 0
  %v1164 = vsel %vm1120, %v1087, 0
  %v1167 = vsel %vm1120, %v1088, 0
  %1169 = vmatpush.msra.mxu0 %v1104
  %1170 = vmatpush.msra.mxu0 %v1103
  %1171 = vmatpush.msra.mxu0 %v1102
  %1172 = vmatpush.msra.mxu0 %v1101
  %1173 = vmatpush.msra.mxu0 %v1100
  %1174 = vmatpush.msra.mxu0 %v1099
  %1175 = vmatpush.msra.mxu0 %v1098
  %1176 = vmatpush.msra.mxu0 %v1097
  %1177 = vmatpush.msra.mxu0 %v1096
  %1178 = vmatpush.msra.mxu0 %v1095
  %1179 = vmatpush.msra.mxu0 %v1094
  %1180 = vmatpush.msra.mxu0 %v1093
  %1181 = vmatpush.msra.mxu0 %v1092
  %1182 = vmatpush.msra.mxu0 %v1091
  %1183 = vmatpush.msra.mxu0 %v1090
  %1184 = vmatpush.msra.mxu0 %v1089
  %1185 = vmatmul.f32.gmra.mxu0 %v1022
  %v1186 = vpop.f32.mrf.mxu0
  %v1187 = vadd.f32 %v1118, %v1186
  %1188 = vmatmul.f32.gmra.mxu0 %v1023
  %v1189 = vpop.f32.mrf.mxu0
  %v1190 = vadd.f32 %v1118, %v1189
  %1191 = vmatmul.f32.gmra.mxu0 %v1024
  %v1192 = vpop.f32.mrf.mxu0
  %v1193 = vadd.f32 %v1118, %v1192
  %1194 = vmatmul.f32.gmra.mxu0 %v1025
  %v1195 = vpop.f32.mrf.mxu0
  %v1196 = vadd.f32 %v1118, %v1195
  %1197 = vmatmul.f32.gmra.mxu0 %v1026
  %v1198 = vpop.f32.mrf.mxu0
  %v1199 = vadd.f32 %v1118, %v1198
  %1200 = vmatmul.f32.gmra.mxu0 %v1027
  %v1201 = vpop.f32.mrf.mxu0
  %v1202 = vadd.f32 %v1118, %v1201
  %1203 = vmatmul.f32.gmra.mxu0 %v1028
  %v1204 = vpop.f32.mrf.mxu0
  %v1205 = vadd.f32 %v1118, %v1204
  %1206 = vmatmul.f32.gmra.mxu0 %v1029
  %v1207 = vpop.f32.mrf.mxu0
  %v1208 = vadd.f32 %v1118, %v1207
  %1209 = vmatmul.f32.gmra.mxu0 %v1030
  %v1210 = vpop.f32.mrf.mxu0
  %v1211 = vadd.f32 %v1118, %v1210
  %1212 = vmatmul.f32.gmra.mxu0 %v1031
  %v1213 = vpop.f32.mrf.mxu0
  %v1214 = vadd.f32 %v1118, %v1213
  %1215 = vmatmul.f32.gmra.mxu0 %v1032
  %v1216 = vpop.f32.mrf.mxu0
  %v1217 = vadd.f32 %v1118, %v1216
  %1218 = vmatmul.f32.gmra.mxu0 %v1033
  %v1219 = vpop.f32.mrf.mxu0
  %v1220 = vadd.f32 %v1118, %v1219
  %1221 = vmatmul.f32.gmra.mxu0 %v1034
  %v1222 = vpop.f32.mrf.mxu0
  %v1223 = vadd.f32 %v1118, %v1222
  %1224 = vmatmul.f32.gmra.mxu0 %v1035
  %v1225 = vpop.f32.mrf.mxu0
  %v1226 = vadd.f32 %v1118, %v1225
  %1227 = vmatmul.f32.gmra.mxu0 %v1036
  %v1228 = vpop.f32.mrf.mxu0
  %v1229 = vadd.f32 %v1118, %v1228
  %1230 = vmatmul.f32.gmra.mxu0 %v1037
  %v1231 = vpop.f32.mrf.mxu0
  %v1232 = vadd.f32 %v1118, %v1231
  %1233 = vdwg.mxu0
  %1234 = vmatpush.msra.mxu0 0.0
  %1235 = vmatpush.msra.mxu0 0.0
  %1236 = vmatpush.msra.mxu0 0.0
  %1237 = vmatpush.msra.mxu0 0.0
  %1238 = vmatpush.msra.mxu0 0.0
  %1239 = vmatpush.msra.mxu0 %v1115
  %1240 = vmatpush.msra.mxu0 %v1114
  %1241 = vmatpush.msra.mxu0 %v1113
  %1242 = vmatpush.msra.mxu0 %v1112
  %1243 = vmatpush.msra.mxu0 %v1111
  %1244 = vmatpush.msra.mxu0 %v1110
  %1245 = vmatpush.msra.mxu0 %v1109
  %1246 = vmatpush.msra.mxu0 %v1108
  %1247 = vmatpush.msra.mxu0 %v1107
  %1248 = vmatpush.msra.mxu0 %v1106
  %1249 = vmatpush.msra.mxu0 %v1105
  %1250 = vmatmul.f32.gmra.mxu0 %v1122
  %v1251 = vpop.f32.mrf.mxu0
  %v1252 = vadd.f32 %v1187, %v1251
  %1253 = vmatmul.f32.gmra.mxu0 %v1125
  %v1254 = vpop.f32.mrf.mxu0
  %v1255 = vadd.f32 %v1190, %v1254
  %1256 = vmatmul.f32.gmra.mxu0 %v1128
  %v1257 = vpop.f32.mrf.mxu0
  %v1258 = vadd.f32 %v1193, %v1257
  %1259 = vmatmul.f32.gmra.mxu0 %v1131
  %v1260 = vpop.f32.mrf.mxu0
  %v1261 = vadd.f32 %v1196, %v1260
  %1262 = vmatmul.f32.gmra.mxu0 %v1134
  %v1263 = vpop.f32.mrf.mxu0
  %v1264 = vadd.f32 %v1199, %v1263
  %1265 = vmatmul.f32.gmra.mxu0 %v1137
  %v1266 = vpop.f32.mrf.mxu0
  %v1267 = vadd.f32 %v1202, %v1266
  %1268 = vmatmul.f32.gmra.mxu0 %v1140
  %v1269 = vpop.f32.mrf.mxu0
  %v1270 = vadd.f32 %v1205, %v1269
  %1271 = vmatmul.f32.gmra.mxu0 %v1143
  %v1272 = vpop.f32.mrf.mxu0
  %v1273 = vadd.f32 %v1208, %v1272
  %1274 = vmatmul.f32.gmra.mxu0 %v1146
  %v1275 = vpop.f32.mrf.mxu0
  %v1276 = vadd.f32 %v1211, %v1275
  %1277 = vmatmul.f32.gmra.mxu0 %v1149
  %v1278 = vpop.f32.mrf.mxu0
  %v1279 = vadd.f32 %v1214, %v1278
  %1280 = vmatmul.f32.gmra.mxu0 %v1152
  %v1281 = vpop.f32.mrf.mxu0
  %v1282 = vadd.f32 %v1217, %v1281
  %1283 = vmatmul.f32.gmra.mxu0 %v1155
  %v1284 = vpop.f32.mrf.mxu0
  %v1285 = vadd.f32 %v1220, %v1284
  %1286 = vmatmul.f32.gmra.mxu0 %v1158
  %v1287 = vpop.f32.mrf.mxu0
  %v1288 = vadd.f32 %v1223, %v1287
  %1289 = vmatmul.f32.gmra.mxu0 %v1161
  %v1290 = vpop.f32.mrf.mxu0
  %v1291 = vadd.f32 %v1226, %v1290
  %1292 = vmatmul.f32.gmra.mxu0 %v1164
  %v1293 = vpop.f32.mrf.mxu0
  %v1294 = vadd.f32 %v1229, %v1293
  %1295 = vmatmul.f32.gmra.mxu0 %v1167
  %v1296 = vpop.f32.mrf.mxu0
  %v1297 = vadd.f32 %v1232, %v1296
  %1298 = vdwg.mxu0
  %1315 = vrot.lane.b32.xlu0 %v300, 32
  %v1316 = vpop.permute.xlu0 %1315
  %1317 = vrot.lane.b32.xlu0 %v303, 32
  %v1318 = vpop.permute.xlu0 %1317
  %1319 = vrot.lane.b32.xlu0 %v306, 32
  %v1320 = vpop.permute.xlu0 %1319
  %1321 = vrot.lane.b32.xlu0 %v309, 32
  %v1322 = vpop.permute.xlu0 %1321
  %1323 = vrot.lane.b32.xlu0 %v312, 32
  %v1324 = vpop.permute.xlu0 %1323
  %1325 = vrot.lane.b32.xlu0 %v315, 32
  %v1326 = vpop.permute.xlu0 %1325
  %1327 = vrot.lane.b32.xlu0 %v318, 32
  %v1328 = vpop.permute.xlu0 %1327
  %1329 = vrot.lane.b32.xlu0 %v321, 32
  %v1330 = vpop.permute.xlu0 %1329
  %1331 = vrot.lane.b32.xlu0 %v324, 32
  %v1332 = vpop.permute.xlu0 %1331
  %1333 = vrot.lane.b32.xlu0 %v327, 32
  %v1334 = vpop.permute.xlu0 %1333
  %1335 = vrot.lane.b32.xlu0 %v330, 32
  %v1336 = vpop.permute.xlu0 %1335
  %1337 = vrot.lane.b32.xlu0 %v333, 32
  %v1338 = vpop.permute.xlu0 %1337
  %1339 = vrot.lane.b32.xlu0 %v336, 32
  %v1340 = vpop.permute.xlu0 %1339
  %1341 = vrot.lane.b32.xlu0 %v339, 32
  %v1342 = vpop.permute.xlu0 %1341
  %1343 = vrot.lane.b32.xlu0 %v342, 32
  %v1344 = vpop.permute.xlu0 %1343
  %1345 = vrot.lane.b32.xlu0 %v345, 32
  %v1346 = vpop.permute.xlu0 %1345
  %vm1363 = vcmask 261120
  %v1364 = vsel %vm1363, %v1252, %v1316
  %v1365 = vsel %vm1363, %v1255, %v1318
  %v1366 = vsel %vm1363, %v1258, %v1320
  %v1367 = vsel %vm1363, %v1261, %v1322
  %v1368 = vsel %vm1363, %v1264, %v1324
  %v1369 = vsel %vm1363, %v1267, %v1326
  %v1370 = vsel %vm1363, %v1270, %v1328
  %v1371 = vsel %vm1363, %v1273, %v1330
  %v1372 = vsel %vm1363, %v1276, %v1332
  %v1373 = vsel %vm1363, %v1279, %v1334
  %v1374 = vsel %vm1363, %v1282, %v1336
  %v1375 = vsel %vm1363, %v1285, %v1338
  %v1376 = vsel %vm1363, %v1288, %v1340
  %v1377 = vsel %vm1363, %v1291, %v1342
  %v1378 = vsel %vm1363, %v1294, %v1344
  %v1379 = vsel %vm1363, %v1297, %v1346
  %v1380 = vsel %vm1072, %v1364, 0.0
  %v1381 = vsel %vm1072, %v1365, 0.0
  %v1382 = vsel %vm1072, %v1366, 0.0
  %v1383 = vsel %vm1072, %v1367, 0.0
  %v1384 = vsel %vm1072, %v1368, 0.0
  %v1385 = vsel %vm1072, %v1369, 0.0
  %v1386 = vsel %vm1072, %v1370, 0.0
  %v1387 = vsel %vm1072, %v1371, 0.0
  %v1388 = vsel %vm1072, %v1372, 0.0
  %v1389 = vsel %vm1072, %v1373, 0.0
  %v1390 = vsel %vm1072, %v1374, 0.0
  %v1391 = vsel %vm1072, %v1375, 0.0
  %v1392 = vsel %vm1072, %v1376, 0.0
  %v1393 = vsel %vm1072, %v1377, 0.0
  %v1394 = vsel %vm1072, %v1378, 0.0
  %v1395 = vsel %vm1072, %v1379, 0.0
  %1396 = vst [vmem:[%s4] sm:$0xff] %v1380
  %1397 = vst [vmem:[%s4 + $0x8] sm:$0xff] %v1381
  %1398 = vst [vmem:[%s4 + $0x10] sm:$0xff] %v1382
  %1399 = vst [vmem:[%s4 + $0x18] sm:$0xff] %v1383
  %1400 = vst [vmem:[%s4 + $0x20] sm:$0xff] %v1384
  %1401 = vst [vmem:[%s4 + $0x28] sm:$0xff] %v1385
  %1402 = vst [vmem:[%s4 + $0x30] sm:$0xff] %v1386
  %1403 = vst [vmem:[%s4 + $0x38] sm:$0xff] %v1387
  %1404 = vst [vmem:[%s4 + $0x40] sm:$0xff] %v1388
  %1405 = vst [vmem:[%s4 + $0x48] sm:$0xff] %v1389
  %1406 = vst [vmem:[%s4 + $0x50] sm:$0xff] %v1390
  %1407 = vst [vmem:[%s4 + $0x58] sm:$0xff] %v1391
  %1408 = vst [vmem:[%s4 + $0x60] sm:$0xff] %v1392
  %1409 = vst [vmem:[%s4 + $0x68] sm:$0xff] %v1393
  %1410 = vst [vmem:[%s4 + $0x70] sm:$0xff] %v1394
  %1411 = vst [vmem:[%s4 + $0x78] sm:$0xff] %v1395
  // Predicated region
  $region18: #{agisnet_block_forward.1} parent=0 // pred_check
    _
  $region19: #{agisnet_block_forward.1} parent=0 // pred_check_branch
    %1413 = sbr.rel (0) target = $region21
  $region20: #{agisnet_block_forward.1} parent=0 // pred_region
    _
  $region21: #{agisnet_block_forward.1} parent=0 // pred_fallthru
    _
  // Predicated region
  $region22: #{agisnet_block_forward.1} parent=0 // pred_check
    _
  $region23: #{agisnet_block_forward.1} parent=0 // pred_check_branch
    %1415 = sbr.rel (0) target = $region25
  $region24: #{agisnet_block_forward.1} parent=0 // pred_region
    _
  $region25: #{agisnet_block_forward.1} parent=0 // pred_fallthru
    _

</llo_original>
